<compile_context>
chip_gen: v7x
topology: tpu7x:2x2x1
jax: 0.10.0
libtpu: 0.0.40
codegen_flags: <defaults>
</compile_context>

<pallas_src>
import functools

import jax
import jax.numpy as jnp
from jax import lax
from jax.experimental import pallas as pl
from jax.experimental.pallas import tpu as pltpu

_LANES = 128
_SUBLANES = 8
# 4096 x 128 f32 = 2 MiB per input per grid step -> 2 inputs x 2 buffers = 8 MiB;
# fits v5e's 16 MiB scoped default while amortizing per-step pipeline overhead.
# TODO(synk): on v7x (3.2 TB/s HBM) 8192 rows amortizes even better; needs a
# chip-generation query to stay safe on v5e.
_MAX_BLOCK_ROWS = 4096
_VMEM_LIMIT = 32 * 1024 * 1024   # explicit, <= physical VMEM on v5e/v6e/v7x


def _smooth_l1(p, t, beta):
    diff = jnp.abs(p - t)
    if beta == 0.0:          # degenerate case: pure L1 (avoids 0/0 in unused branch)
        return diff
    return jnp.where(diff < beta, (0.5 / beta) * diff * diff, diff - 0.5 * beta)


def _mean_kernel(pred_ref, true_ref, out_ref, *, beta, rows, block_rows,
                 steps_per_core, last_block, need_mask):
    i = pl.program_id(1)

    @pl.when(i == 0)
    def _():
        out_ref[...] = jnp.zeros_like(out_ref)

    p = pred_ref[...].astype(jnp.float32)
    t = true_ref[...].astype(jnp.float32)
    loss = _smooth_l1(p, t, beta)

    def _fold(x):   # (block_rows, 128) -> (8, 128): VPU adds only, no XLU reduce
        return x.reshape(block_rows // _SUBLANES, _SUBLANES, _LANES).sum(axis=0)

    if need_mask:
        blk = pl.program_id(0) * steps_per_core + i

        # Only the single ragged last block pays the iota/compare/select cost.
        @pl.when(blk != last_block)
        def _():
            out_ref[...] += _fold(loss)

        @pl.when(blk == last_block)
        def _():
            row = lax.broadcasted_iota(jnp.int32, loss.shape, 0) + blk * block_rows
            out_ref[...] += _fold(jnp.where(row < rows, loss, 0.0))
    else:
        out_ref[...] += _fold(loss)


def _class_kernel(pred_ref, true_ref, out_ref, *, beta):
    b = pl.program_id(1)

    @pl.when(b == 0)
    def _():
        out_ref[...] = jnp.zeros_like(out_ref)

    p = pred_ref[...].astype(jnp.float32)   # (bblk, cblk, H*W)
    t = true_ref[...].astype(jnp.float32)
    # Batch reduction accumulated directly into the resident f32 output block.
    out_ref[...] += jnp.sum(_smooth_l1(p, t, beta), axis=0)


def smooth_l1_loss(y_pred, y_true, beta=1.0, mean_class=True, *,
                   max_block_rows=_MAX_BLOCK_ROWS):
    assert y_pred.shape == y_true.shape
    beta = float(beta)
    out_dtype = y_pred.dtype
    itemsize = jnp.dtype(y_pred.dtype).itemsize

    if mean_class:
        count = y_pred.size
        p_flat = y_pred.reshape(-1)            # native dtype; cast inside kernel
        t_flat = y_true.reshape(-1)

        tile = _SUBLANES * _LANES              # 1024
        bulk = (count // tile) * tile
        tail = count - bulk

        tail_sum = jnp.float32(0.0)
        if tail:
            # <1024 trailing elements folded in with plain jnp — no full-tensor
            # jnp.pad copy (which would double HBM traffic for ragged sizes).
            tail_sum = jnp.sum(_smooth_l1(p_flat[bulk:].astype(jnp.float32),
                                          t_flat[bulk:].astype(jnp.float32), beta))

        if bulk == 0:
            return (tail_sum / jnp.float32(count)).astype(out_dtype)

        rows = bulk // _LANES                  # multiple of 8 by construction
        p2 = p_flat[:bulk].reshape(rows, _LANES)
        t2 = t_flat[:bulk].reshape(rows, _LANES)

        block_rows = min(max_block_rows, rows)  # multiple of 8, or full extent
        steps = -(-rows // block_rows)
        # Leading "parallel" axis -> both TensorCores on v7x (harmless serial loop
        # on v5e/v6e).  Only split when it divides evenly so no grid block is
        # fully out of bounds.
        num_par = 2 if (steps >= 2 and steps % 2 == 0) else 1
        steps_per_core = steps // num_par
        need_mask = (rows % block_rows) != 0
        last_block = steps - 1

        kernel = functools.partial(
            _mean_kernel, beta=beta, rows=rows, block_rows=block_rows,
            steps_per_core=steps_per_core, last_block=last_block,
            need_mask=need_mask)

        partials = pl.pallas_call(
            kernel,
            out_shape=jax.ShapeDtypeStruct((num_par * _SUBLANES, _LANES),
                                           jnp.float32),
            grid_spec=pltpu.PrefetchScalarGridSpec(
                num_scalar_prefetch=0,
                grid=(num_par, steps_per_core),
                in_specs=[pl.BlockSpec((block_rows, _LANES),
                                       lambda p, i: (p * steps_per_core + i, 0)),
                          pl.BlockSpec((block_rows, _LANES),
                                       lambda p, i: (p * steps_per_core + i, 0))],
                out_specs=pl.BlockSpec((_SUBLANES, _LANES), lambda p, i: (p, 0))),
            compiler_params=pltpu.CompilerParams(
                dimension_semantics=("parallel", "arbitrary"),
                vmem_limit_bytes=_VMEM_LIMIT),
            cost_estimate=pl.CostEstimate(
                flops=7 * bulk, transcendentals=0,
                bytes_accessed=2 * bulk * itemsize
                + num_par * _SUBLANES * _LANES * 4),
        )(p2, t2)

        # Tiny (<=2x8x128) final cross-lane reduce + normalization, done once.
        total = jnp.sum(partials) + tail_sum
        return (total / jnp.float32(count)).astype(out_dtype)

    # mean_class=False: torch.mean(loss, dim=(0, -1)) on NCHW -> (C, H)
    assert y_pred.ndim == 4, "mean_class=False path expects NCHW input"
    B, C, H, W = y_pred.shape
    HW = H * W
    # Merge H,W so the lane axis is H*W (>= W): full lane/vreg utilisation even
    # when W < 128.  Trailing-dim merges are free (no copy) reshapes.
    p3 = y_pred.reshape(B, C, HW)
    t3 = y_true.reshape(B, C, HW)

    budget = 2 * 1024 * 1024                  # ~2 MiB per input block per step

    def _divisors(n):
        return [d for d in range(1, n + 1) if n % d == 0]

    # Channel tile: second-to-last block dim must be a multiple of 8 or full C.
    c_cands = [d for d in _divisors(C) if d == C or d % 8 == 0]
    fitting = [d for d in c_cands if d * HW * itemsize <= budget]
    cblk = max(fitting) if fitting else min(c_cands)
    # TODO(synk): if even the smallest valid channel tile exceeds the VMEM budget
    # (very large H*W), additionally tile H and finish the reduce wrapper-side.

    b_fitting = [d for d in _divisors(B) if d * cblk * HW * itemsize <= budget]
    bblk = max(b_fitting) if b_fitting else 1

    kernel = functools.partial(_class_kernel, beta=beta)
    sums = pl.pallas_call(
        kernel,
        out_shape=jax.ShapeDtypeStruct((C, HW), jnp.float32),
        grid_spec=pltpu.PrefetchScalarGridSpec(
            num_scalar_prefetch=0,
            grid=(C // cblk, B // bblk),
            in_specs=[pl.BlockSpec((bblk, cblk, HW), lambda c, b: (b, c, 0)),
                      pl.BlockSpec((bblk, cblk, HW), lambda c, b: (b, c, 0))],
            out_specs=pl.BlockSpec((cblk, HW), lambda c, b: (c, 0))),
        compiler_params=pltpu.CompilerParams(
            dimension_semantics=("parallel", "arbitrary"),
            vmem_limit_bytes=_VMEM_LIMIT),
        cost_estimate=pl.CostEstimate(
            flops=7 * B * C * HW, transcendentals=0,
            bytes_accessed=2 * B * C * HW * itemsize + C * HW * 4),
    )(p3, t3)

    # One tiny (C, H*W) -> (C, H) lane reduce + normalization outside the kernel.
    out = sums.reshape(C, H, W).sum(axis=-1) / jnp.float32(B * W)
    return out.astype(out_dtype)


def _reference(y_pred, y_true, beta=1.0, mean_class=True):
    diff = jnp.abs(y_pred.astype(jnp.float32) - y_true.astype(jnp.float32))
    loss = jnp.where(diff < beta, 0.5 * diff * diff / beta, diff - 0.5 * beta)
    if mean_class:
        return jnp.mean(loss)
    return jnp.mean(loss, axis=(0, -1))


if __name__ == "__main__":
    key = jax.random.PRNGKey(0)
    k1, k2, k3, k4 = jax.random.split(key, 4)
    shape = (2, 4, 16, 16)  # NCHW
    y_pred = jax.random.normal(k1, shape, dtype=jnp.float32)
    y_true = jax.random.normal(k2, shape, dtype=jnp.float32)

    # mean_class=True (module default): scalar mean over all elements
    out_mean = jax.block_until_ready(smooth_l1_loss(y_pred, y_true,
                                                    beta=1.0, mean_class=True))
    ref_mean = _reference(y_pred, y_true, beta=1.0, mean_class=True)
    assert jnp.allclose(out_mean, ref_mean, atol=1e-5, rtol=1e-5), (out_mean, ref_mean)

    # mean_class=False: mean over dims (0, -1) -> (C, H)
    out_cls = jax.block_until_ready(smooth_l1_loss(y_pred, y_true,
                                                   beta=1.0, mean_class=False))
    ref_cls = _reference(y_pred, y_true, beta=1.0, mean_class=False)
    assert out_cls.shape == (4, 16)
    assert jnp.allclose(out_cls, ref_cls, atol=1e-5, rtol=1e-5)

    # Ragged element count (count % 1024 != 0): exercises the jnp tail path
    # (no full-tensor pad copy).
    shape2 = (2, 3, 17, 19)   # 1938 elements -> 1024-element bulk + 914 tail
    yp2 = jax.random.normal(k3, shape2, dtype=jnp.float32)
    yt2 = jax.random.normal(k4, shape2, dtype=jnp.float32)
    out2 = jax.block_until_ready(smooth_l1_loss(yp2, yt2, beta=1.0, mean_class=True))
    ref2 = _reference(yp2, yt2, beta=1.0, mean_class=True)
    assert jnp.allclose(out2, ref2, atol=1e-5, rtol=1e-5), (out2, ref2)

    # Multi-block grid with dual partial sums + pl.when-gated ragged last block
    # (tiny max_block_rows override keeps this test small).
    shape3 = (3, 4, 16, 16)   # 3072 elems -> rows=24, block_rows=16 -> ragged last
    yp3 = jax.random.normal(k1, shape3, dtype=jnp.float32)
    yt3 = jax.random.normal(k2, shape3, dtype=jnp.float32)
    out3 = jax.block_until_ready(smooth_l1_loss(yp3, yt3, beta=1.0,
                                                mean_class=True, max_block_rows=16))
    ref3 = _reference(yp3, yt3, beta=1.0, mean_class=True)
    assert jnp.allclose(out3, ref3, atol=1e-5, rtol=1e-5), (out3, ref3)

    print("KERNEL_OK")
</pallas_src>

<mosaic_0001>
module attributes {stable_mosaic.version = 11 : i64} {
  func.func @_mean_kernel(%arg0: i32, %arg1: i32, %arg2: memref<16x128xf32, #tpu.memory_space<vmem>>, %arg3: memref<16x128xf32, #tpu.memory_space<vmem>>, %arg4: memref<8x128xf32, #tpu.memory_space<vmem>>) attributes {dimension_semantics = [#tpu.dimension_semantics<parallel>, #tpu.dimension_semantics<arbitrary>], iteration_bounds = array<i64: 1, 1>, scalar_prefetch = 0 : i64, scratch_operands = 0 : i64, tpu.core_type = #tpu.core_type<tc>, window_params = [{transform_indices = @transform_0, window_bounds = array<i64: 16, 128>}, {transform_indices = @transform_1, window_bounds = array<i64: 16, 128>}, {transform_indices = @transform_2, window_bounds = array<i64: 8, 128>}]} {
    %c0_i32 = arith.constant 0 : i32
    %0 = arith.cmpi eq, %arg1, %c0_i32 : i32
    %1 = arith.extui %0 : i1 to i32
    %c0_i32_0 = arith.constant 0 : i32
    %2 = arith.cmpi ne, %1, %c0_i32_0 : i32
    scf.if %2 {
      %cst_11 = arith.constant 0.000000e+00 : f32
      %20 = vector.broadcast %cst_11 : f32 to vector<8x128xf32>
      %c0_12 = arith.constant 0 : index
      %c0_13 = arith.constant 0 : index
      %21 = vector.load %arg4[%c0_12, %c0_13] : memref<8x128xf32, #tpu.memory_space<vmem>>, vector<8x128xf32>
      tpu.vector_store %arg4[%c0_12, %c0_13], %20 {strides = array<i32>} : memref<8x128xf32, #tpu.memory_space<vmem>>, vector<8x128xf32>,
    } else {
    }
    %c0 = arith.constant 0 : index
    %c0_1 = arith.constant 0 : index
    %3 = vector.load %arg2[%c0, %c0_1] : memref<16x128xf32, #tpu.memory_space<vmem>>, vector<16x128xf32>
    %c0_2 = arith.constant 0 : index
    %c0_3 = arith.constant 0 : index
    %4 = vector.load %arg3[%c0_2, %c0_3] : memref<16x128xf32, #tpu.memory_space<vmem>>, vector<16x128xf32>
    %5 = arith.subf %3, %4 : vector<16x128xf32>
    %6 = math.absf %5 : vector<16x128xf32>
    %cst = arith.constant 1.000000e+00 : f32
    %7 = vector.broadcast %cst : f32 to vector<16x128xf32>
    %8 = arith.cmpf olt, %6, %7 : vector<16x128xf32>
    %cst_4 = arith.constant 5.000000e-01 : f32
    %9 = vector.broadcast %cst_4 : f32 to vector<16x128xf32>
    %10 = arith.mulf %9, %6 : vector<16x128xf32>
    %11 = arith.mulf %10, %6 : vector<16x128xf32>
    %cst_5 = arith.constant 5.000000e-01 : f32
    %12 = vector.broadcast %cst_5 : f32 to vector<16x128xf32>
    %13 = arith.subf %6, %12 : vector<16x128xf32>
    %14 = arith.select %8, %11, %13 : vector<16x128xi1>, vector<16x128xf32>
    %c0_6 = arith.constant 0 : index
    %c0_7 = arith.constant 0 : index
    %15 = vector.load %arg4[%c0_6, %c0_7] : memref<8x128xf32, #tpu.memory_space<vmem>>, vector<8x128xf32>
    %16 = vector.shape_cast %14 : vector<16x128xf32> to vector<2x8x128xf32>
    %cst_8 = arith.constant dense<0.000000e+00> : vector<8x128xf32>
    %17 = vector.multi_reduction <add>, %16, %cst_8 [0] : vector<2x8x128xf32> to vector<8x128xf32>
    %18 = arith.addf %15, %17 : vector<8x128xf32>
    %c0_9 = arith.constant 0 : index
    %c0_10 = arith.constant 0 : index
    %19 = vector.load %arg4[%c0_9, %c0_10] : memref<8x128xf32, #tpu.memory_space<vmem>>, vector<8x128xf32>
    tpu.vector_store %arg4[%c0_9, %c0_10], %18 {strides = array<i32>} : memref<8x128xf32, #tpu.memory_space<vmem>>, vector<8x128xf32>,
    return
  }
  func.func @transform_0(%arg0: i32, %arg1: i32) -> (i32, i32) {
    %c1_i32 = arith.constant 1 : i32
    %0 = arith.muli %arg0, %c1_i32 : i32
    %1 = arith.addi %0, %arg1 : i32
    %c0_i32 = arith.constant 0 : i32
    %c0_i32_0 = arith.constant 0 : i32
    return %1, %c0_i32 : i32, i32
  }
  func.func @transform_1(%arg0: i32, %arg1: i32) -> (i32, i32) {
    %c1_i32 = arith.constant 1 : i32
    %0 = arith.muli %arg0, %c1_i32 : i32
    %1 = arith.addi %0, %arg1 : i32
    %c0_i32 = arith.constant 0 : i32
    %c0_i32_0 = arith.constant 0 : i32
    return %1, %c0_i32 : i32, i32
  }
  func.func @transform_2(%arg0: i32, %arg1: i32) -> (i32, i32) {
    %c0_i32 = arith.constant 0 : i32
    %c0_i32_0 = arith.constant 0 : i32
    return %arg0, %c0_i32 : i32, i32
  }
}

</mosaic_0001>

<llo_original>
// kernel: tpu_custom_call.1
$region0: #{tpu_custom_call.1}
  #allocation0 [shape = 'u32[]', space=smem, size = 0x4, offset = 0x4, fixed_abs, tag = 'smem constant byte address 0x4 - core index']
  #allocation1 [shape = 'u32[144,128]{1,0:T(1,128)}', space=vmem, size = 0x12000, scoped, tag = 'internal scratch']
  %s0 = inlined_call_operand.hbm [shape: f32[16,128], index: 0, kind: input, shape index: {}]
  %s1 = inlined_call_operand.hbm [shape: f32[16,128], index: 1, kind: input, shape index: {}]
  %s2 = inlined_call_operand.hbm [shape: f32[8,128], index: 2, kind: output, shape index: {}]
  %s3 = sld [smem:[#allocation0]]
  $region30: #{tpu_custom_call.1} parent=0
    _
  %s5 = ssub.s32 1, %s3
  %s6 = scalar_select 0, %s5, %s3
  $region1: #{tpu_custom_call.1} parent=0
    #allocation2 [shape = 'u8[8192]{0}', space=vmem, size = 0x2000, scoped, tag = 'input window, operand 0, single buffered']
    #allocation3 [shape = 's32[1]{0}', space=sflag, size = 0x4, scoped, tag = 'scoped memory for tpu_custom_call.1']
    #allocation4 [shape = 's32[1]{0}', space=sflag, size = 0x4, scoped, tag = 'scoped memory for tpu_custom_call.1']
    #allocation5 [shape = 'u8[8192]{0}', space=vmem, size = 0x2000, scoped, tag = 'input window, operand 1, single buffered']
    #allocation6 [shape = 's32[1]{0}', space=sflag, size = 0x4, scoped, tag = 'scoped memory for tpu_custom_call.1']
    #allocation7 [shape = 'u8[4096]{0}', space=vmem, size = 0x1000, scoped, tag = 'output window, operand 0, single buffered']
    %7 = vsyncpa [#allocation3], 0
    %8 = vsyncpa [#allocation6], 0
    %9 = vsyncpa [#allocation4], 0
    // Predicated region
    $region2: #{tpu_custom_call.1} parent=1 // pred_check
      _
    $region3: #{tpu_custom_call.1} parent=1 // pred_check_branch
      %11 = sbr.rel (0) target = $region5
    $region4: #{tpu_custom_call.1} parent=1 // pred_region
      %s12 = sadd.s32 0, 0
      %s13 = smul.u32 2, %s12
      %s15 = ssub.s32 256, 256
      %16 = vsyncadd [#allocation3], %s15
      %s17 = smul.addr %s13, 128
      %s18 = scalar_lea.hbm %s0, %s17
      %s19 = sshll.u32 [#allocation2], 4
      %s20 = int_to_ptr.vmem [resolvable:$true] %s19
      %25 = dma.hbm_to_vmem [thread:$0]  %s18, 256, %s20, [#allocation3], 128, 128, 8
    $region5: #{tpu_custom_call.1} parent=1 // pred_fallthru
      _
    // Predicated region
    $region6: #{tpu_custom_call.1} parent=1 // pred_check
      _
    $region7: #{tpu_custom_call.1} parent=1 // pred_check_branch
      %27 = sbr.rel (0) target = $region9
    $region8: #{tpu_custom_call.1} parent=1 // pred_region
      %s28 = sadd.s32 0, 0
      %s29 = smul.u32 2, %s28
      %s31 = ssub.s32 256, 256
      %32 = vsyncadd [#allocation6], %s31
      %s33 = smul.addr %s29, 128
      %s34 = scalar_lea.hbm %s1, %s33
      %s35 = sshll.u32 [#allocation5], 4
      %s36 = int_to_ptr.vmem [resolvable:$true] %s35
      %41 = dma.hbm_to_vmem [thread:$0]  %s34, 256, %s36, [#allocation6], 128, 128, 8
    $region9: #{tpu_custom_call.1} parent=1 // pred_fallthru
      _
    // Predicated region
    $region10: #{tpu_custom_call.1} parent=1 // pred_check
      _
    $region11: #{tpu_custom_call.1} parent=1 // pred_check_branch
      %43 = sbr.rel (0) target = $region13
    $region12: #{tpu_custom_call.1} parent=1 // pred_region
      %44 = dma.done [#allocation3], 256
    $region13: #{tpu_custom_call.1} parent=1 // pred_fallthru
      _
    // Predicated region
    $region14: #{tpu_custom_call.1} parent=1 // pred_check
      _
    $region15: #{tpu_custom_call.1} parent=1 // pred_check_branch
      %46 = sbr.rel (0) target = $region17
    $region16: #{tpu_custom_call.1} parent=1 // pred_region
      %47 = dma.done [#allocation6], 256
    $region17: #{tpu_custom_call.1} parent=1 // pred_fallthru
      _
    %s48 = sadd.s32 0, 0
    %s49 = smul.u32 2, %s48
    %s50 = sadd.s32 0, 0
    %s51 = smul.u32 2, %s50
    %p52 = scmp.eq.s32.totalorder 0, 0
    // Predicated region
    $region18: #{tpu_custom_call.1} parent=1 // pred_check
      %p53 = pneg %p52
    $region19: #{tpu_custom_call.1} parent=1 // pred_check_branch
      %55 = sbr.rel (%p53) target = $region21
    $region20: #{tpu_custom_call.1} parent=1 // pred_region
      %56 = vst [vmem:[#allocation7] sm:$0xff] 0.0
    $region21: #{tpu_custom_call.1} parent=1 // pred_fallthru
      _
    %v57 = vld [vmem:[#allocation2] sm:$0xff]
    %v58 = vld [vmem:[#allocation2 + $0x8] sm:$0xff]
    %v59 = vld [vmem:[#allocation5] sm:$0xff]
    %v60 = vld [vmem:[#allocation5 + $0x8] sm:$0xff]
    %v61 = vsub.f32 %v57, %v59
    %v62 = vsub.f32 %v58, %v60
    %v63 = vand.u32 2147483647, %v61
    %v64 = vand.u32 2147483647, %v62
    %vm65 = vcmp.lt.f32.partialorder %v63, 1.0
    %vm66 = vcmp.lt.f32.partialorder %v64, 1.0
    %v67 = vmul.f32 %v63, 0.5
    %v68 = vmul.f32 %v64, 0.5
    %v69 = vmul.f32 %v67, %v63
    %v70 = vmul.f32 %v68, %v64
    %v71 = vsub.f32 %v63, 0.5
    %v72 = vsub.f32 %v64, 0.5
    %v73 = vsel %vm65, %v69, %v71
    %v74 = vsel %vm66, %v70, %v72
    %v75 = vld [vmem:[#allocation7] sm:$0xff]
    %v76 = vadd.f32 %v73, %v74
    %v77 = vadd.f32 %v75, %v76
    %78 = vst [vmem:[#allocation7] sm:$0xff] %v77
    // Predicated region
    $region22: #{tpu_custom_call.1} parent=1 // pred_check
      _
    $region23: #{tpu_custom_call.1} parent=1 // pred_check_branch
      %80 = sbr.rel (0) target = $region25
    $region24: #{tpu_custom_call.1} parent=1 // pred_region
      %s82 = ssub.s32 128, 128
      %83 = vsyncadd [#allocation4], %s82
      %s85 = sshll.u32 [#allocation7], 4
      %s86 = int_to_ptr.vmem [resolvable:$true] %s85
      %88 = dma.vmem_to_hbm [thread:$0]  %s86, 128, %s2, [#allocation4]
    $region25: #{tpu_custom_call.1} parent=1 // pred_fallthru
      _
    // Predicated region
    $region26: #{tpu_custom_call.1} parent=1 // pred_check
      _
    $region27: #{tpu_custom_call.1} parent=1 // pred_check_branch
      %90 = sbr.rel (0) target = $region29
    $region28: #{tpu_custom_call.1} parent=1 // pred_region
      %91 = dma.done [#allocation4], 128
    $region29: #{tpu_custom_call.1} parent=1 // pred_fallthru
      _
    %92 = vsyncpa [#allocation3], 1
    %93 = vsyncpa [#allocation6], 1
    %94 = vsyncpa [#allocation4], 1

</llo_original>
